<compile_context>
chip_gen: v7x
topology: tpu7x:2x2x1
jax: 0.10.0
libtpu: 0.0.40
codegen_flags: <defaults>
</compile_context>

<pallas_src>
import functools

import jax
import jax.numpy as jnp
from jax.experimental import pallas as pl
from jax.experimental.pallas import tpu as pltpu


_LOOKAHEAD_CHUNKS = 2  # chunk waves kept in flight ahead of the one computed


def _round_up(x: int, m: int) -> int:
    return (x + m - 1) // m * m


def _pick_chunk(tile_t: int, n_vocab: int) -> int:
    # Rows per DMA wave (must divide TILE_T; wait descriptor needs <= V rows).
    for c in (32, 64, 16, 8):
        if c <= tile_t and c <= n_vocab and tile_t % c == 0:
            return c
    return 8


def _layernorm_rows(x, gamma, beta):
    # nn.LayerNorm semantics: biased variance, eps = 1e-5.
    mean = jnp.mean(x, axis=-1, keepdims=True)
    xc = x - mean
    var = jnp.mean(xc * xc, axis=-1, keepdims=True)
    inv = jax.lax.rsqrt(var + 1e-5)
    return xc * inv * gamma + beta


def _make_vmem_table_kernel(tile_t):
    """Small-vocab fast path: gather from a VMEM-resident table (no row DMAs)."""

    def kernel(ids_smem, ws_ref, table_ref, wse_base_ref, wse_delta_ref,
               gamma_ref, beta_ref, out_ref, gathered):
        base = pl.program_id(0) * tile_t

        # Row gather via dynamic sublane slices inside VMEM.
        @pl.loop(0, tile_t)
        def _(r):
            tok_id = ids_smem[base + r]
            gathered[pl.ds(r, 1), :] = table_ref[pl.ds(tok_id, 1), :]

        x = gathered[...].astype(jnp.float32)
        # word_start in {0, 1}: linear select against precomputed (base, delta).
        x = x + wse_base_ref[...] + ws_ref[...] * wse_delta_ref[...]
        out_ref[...] = _layernorm_rows(x, gamma_ref[...],
                                       beta_ref[...]).astype(out_ref.dtype)

    return kernel


def _make_hbm_gather_kernel(tile_t, chunk, num_chunks):
    """Large-vocab path: per-row HBM DMAs in look-ahead chunk waves, with the
    ws-add + LayerNorm of one chunk overlapping later chunks' DMAs."""

    def kernel(ids_smem, ws_ref, tok_hbm, wse_base_ref, wse_delta_ref,
               gamma_ref, beta_ref, out_ref, gathered, copy_sem):
        base = pl.program_id(0) * tile_t

        def issue_chunk(c):
            # One small DMA per row; all rows of wave `c` signal copy_sem[c].
            @pl.loop(0, chunk)
            def _(j):
                r = c * chunk + j
                tok_id = ids_smem[base + r]
                pltpu.make_async_copy(
                    tok_hbm.at[pl.ds(tok_id, 1), :],
                    gathered.at[pl.ds(r, 1), :],
                    copy_sem.at[c],
                ).start()

        # Prime the first look-ahead waves (bounds in-flight descriptors).
        for c in range(min(_LOOKAHEAD_CHUNKS, num_chunks)):
            issue_chunk(c)

        # Hoist loop-invariant (1, D) rows out of the chunk loop.
        wse_base = wse_base_ref[...]
        wse_delta = wse_delta_ref[...]
        gamma = gamma_ref[...]
        beta = beta_ref[...]

        @pl.loop(0, num_chunks)
        def _(c):
            # Keep the DMA queue fed before blocking on the current wave.
            @pl.when(c + _LOOKAHEAD_CHUNKS < num_chunks)
            def _():
                issue_chunk(c + _LOOKAHEAD_CHUNKS)

            start = pl.multiple_of(c * chunk, chunk)
            # One aggregated wait: byte count equals the `chunk` row copies
            # signalled on copy_sem[c]; dst names exactly the rows read below.
            pltpu.make_async_copy(
                tok_hbm.at[pl.ds(0, chunk), :],
                gathered.at[pl.ds(start, chunk), :],
                copy_sem.at[c],
            ).wait()

            x = gathered[pl.ds(start, chunk), :].astype(jnp.float32)
            x = x + wse_base + ws_ref[pl.ds(start, chunk), :] * wse_delta
            out_ref[pl.ds(start, chunk), :] = _layernorm_rows(
                x, gamma, beta).astype(out_ref.dtype)

    return kernel


@functools.partial(jax.jit,
                   static_argnames=("tile_t", "use_vmem_table", "out_dtype"))
def word_embedding(input_ids, word_start, token_emb, word_start_emb, gamma,
                   beta, *, tile_t: int = 512, use_vmem_table=None,
                   out_dtype=None):
    """input_ids, word_start: (B, N) int.  Returns (B, N, D).

    The module's `assert n <= max_seq_length` is a host-side shape check and
    is left to the caller.
    """
    B, N = input_ids.shape
    V, D = token_emb.shape
    T = B * N
    tbl_dtype = token_emb.dtype
    if out_dtype is None:
        out_dtype = tbl_dtype

    # Token-axis tiling: big tiles amortize per-grid-step overhead, but prefer
    # >= 2 tiles so the "parallel" axis can feed both v7x TensorCores.
    TILE_T = max(8, min(tile_t, _round_up(T, 8)))
    if TILE_T > 8 and _round_up(T, TILE_T) // TILE_T < 2:
        TILE_T = _round_up((TILE_T + 1) // 2, 8)
    T_pad = _round_up(T, TILE_T)
    num_tiles = T_pad // TILE_T

    tbl_item = jnp.dtype(tbl_dtype).itemsize
    out_item = jnp.dtype(out_dtype).itemsize
    table_bytes = V * D * tbl_item
    if use_vmem_table is None:
        # Conservative resident-table budget that also fits v7x's smaller VMEM.
        use_vmem_table = table_bytes <= (4 << 20)

    # Clamp ids into [0, V-1] so the data-dependent gather can never read
    # outside the table (PyTorch would raise on out-of-range ids instead).
    ids_flat = jnp.clip(input_ids.reshape(T).astype(jnp.int32), 0, V - 1)
    ids_pad = jnp.pad(ids_flat, (0, T_pad - T))
    ws_col = jnp.pad(word_start.reshape(T, 1).astype(jnp.float32),
                     ((0, T_pad - T), (0, 0)))

    # word_start in {0, 1} -> precompute (base, delta) rows once (tiny).
    wse_f32 = word_start_emb.astype(jnp.float32)
    wse_base = wse_f32[0:1, :]
    wse_delta = wse_f32[1:2, :] - wse_base
    gamma2 = gamma.reshape(1, D).astype(jnp.float32)
    beta2 = beta.reshape(1, D).astype(jnp.float32)

    const_spec = pl.BlockSpec((1, D), lambda i, ids: (0, 0))

    vmem_need = (2 * TILE_T * D * out_item       # double-buffered output
                 + 2 * TILE_T * 4                # double-buffered word_start
                 + TILE_T * D * tbl_item         # gathered scratch
                 + 8 * D * 4)                    # (1, D) constants
    if use_vmem_table:
        kernel = _make_vmem_table_kernel(TILE_T)
        table_spec = pl.BlockSpec((V, D), lambda i, ids: (0, 0))   # resident
        scratch_shapes = [pltpu.VMEM((TILE_T, D), tbl_dtype)]
        vmem_need += 2 * table_bytes
    else:
        assert V >= 8, "HBM-gather path expects at least 8 vocab rows"
        chunk = _pick_chunk(TILE_T, V)
        num_chunks = TILE_T // chunk
        kernel = _make_hbm_gather_kernel(TILE_T, chunk, num_chunks)
        table_spec = pl.BlockSpec(memory_space=pl.ANY)             # raw HBM
        scratch_shapes = [pltpu.VMEM((TILE_T, D), tbl_dtype),
                          pltpu.SemaphoreType.DMA((num_chunks,))]

    vmem_limit = int(max(vmem_need * 5 // 4 + (2 << 20), 32 << 20))

    out = pl.pallas_call(
        kernel,
        out_shape=jax.ShapeDtypeStruct((T_pad, D), out_dtype),
        grid_spec=pltpu.PrefetchScalarGridSpec(
            num_scalar_prefetch=1,                  # token ids -> SMEM
            grid=(num_tiles,),
            in_specs=[
                pl.BlockSpec((TILE_T, 1), lambda i, ids: (i, 0)),   # word_start
                table_spec,                                          # token table
                const_spec,                                          # wse base
                const_spec,                                          # wse delta
                const_spec,                                          # gamma
                const_spec,                                          # beta
            ],
            out_specs=pl.BlockSpec((TILE_T, D), lambda i, ids: (i, 0)),
            scratch_shapes=scratch_shapes,
        ),
        compiler_params=pltpu.CompilerParams(
            dimension_semantics=("parallel",),
            vmem_limit_bytes=vmem_limit),
    )(ids_pad, ws_col, token_emb, wse_base, wse_delta, gamma2, beta2)

    return out[:T].reshape(B, N, D)


if __name__ == "__main__":
    key = jax.random.PRNGKey(0)
    k_tok, k_wse, k_ids, k_ws = jax.random.split(key, 4)

    def reference(input_ids, word_start, token_emb, word_start_emb, gamma, beta):
        x = token_emb[input_ids] + word_start_emb[word_start]
        mean = x.mean(-1, keepdims=True)
        var = ((x - mean) ** 2).mean(-1, keepdims=True)
        return (x - mean) * jax.lax.rsqrt(var + 1e-5) * gamma + beta

    # Config consistent with the module: n_vocab=64, embedding_dim=32,
    # max_seq_length=8, batch=2.  nn.Embedding init: N(0,1); LN: gamma=1, beta=0.
    B, N, V, D = 2, 8, 64, 32
    token_emb = jax.random.normal(k_tok, (V, D), dtype=jnp.float32)
    word_start_emb = jax.random.normal(k_wse, (2, D), dtype=jnp.float32)
    gamma = jnp.ones((D,), dtype=jnp.float32)
    beta = jnp.zeros((D,), dtype=jnp.float32)
    input_ids = jax.random.randint(k_ids, (B, N), 0, V, dtype=jnp.int32)
    word_start = jax.random.randint(k_ws, (B, N), 0, 2, dtype=jnp.int32)

    # Path A (auto): table resident in VMEM, dynamic-slice gather.
    y = word_embedding(input_ids, word_start, token_emb, word_start_emb,
                       gamma, beta)
    jax.block_until_ready(y)
    ref = reference(input_ids, word_start, token_emb, word_start_emb, gamma, beta)
    assert y.shape == (B, N, D)
    assert jnp.allclose(y, ref, atol=1e-4, rtol=1e-4), \
        f"VMEM-table path max abs err {jnp.max(jnp.abs(y - ref))}"

    # Path B (forced): HBM row-gather with chunked DMA waves overlapped with
    # the fused ws-add + LayerNorm (2 grid tiles, 2 chunk waves per tile).
    B2, N2 = 2, 64
    k_ids2, k_ws2 = jax.random.split(k_ids, 2)
    input_ids2 = jax.random.randint(k_ids2, (B2, N2), 0, V, dtype=jnp.int32)
    word_start2 = jax.random.randint(k_ws2, (B2, N2), 0, 2, dtype=jnp.int32)
    y2 = word_embedding(input_ids2, word_start2, token_emb, word_start_emb,
                        gamma, beta, tile_t=64, use_vmem_table=False)
    jax.block_until_ready(y2)
    ref2 = reference(input_ids2, word_start2, token_emb, word_start_emb,
                     gamma, beta)
    assert y2.shape == (B2, N2, D)
    assert jnp.allclose(y2, ref2, atol=1e-4, rtol=1e-4), \
        f"HBM-gather path max abs err {jnp.max(jnp.abs(y2 - ref2))}"

    print("KERNEL_OK")
</pallas_src>

<mosaic_0001>
module attributes {stable_mosaic.version = 11 : i64} {
  func.func @kernel(%arg0: i32, %arg1: memref<16xi32, #tpu.memory_space<smem>>, %arg2: memref<8x1xf32, #tpu.memory_space<vmem>>, %arg3: memref<64x32xf32, #tpu.memory_space<vmem>>, %arg4: memref<1x32xf32, #tpu.memory_space<vmem>>, %arg5: memref<1x32xf32, #tpu.memory_space<vmem>>, %arg6: memref<1x32xf32, #tpu.memory_space<vmem>>, %arg7: memref<1x32xf32, #tpu.memory_space<vmem>>, %arg8: memref<8x32xf32, #tpu.memory_space<vmem>>, %arg9: memref<8x32xf32, #tpu.memory_space<vmem>>) attributes {dimension_semantics = [#tpu.dimension_semantics<parallel>], iteration_bounds = array<i64: 2>, scalar_prefetch = 1 : i64, scratch_operands = 1 : i64, tpu.core_type = #tpu.core_type<tc>, window_params = [{transform_indices = @transform_0, window_bounds = array<i64: 8, 1>}, {pipeline_mode = #tpu.pipeline_mode<synchronous>, transform_indices = @transform_1, window_bounds = array<i64: 64, 32>}, {pipeline_mode = #tpu.pipeline_mode<synchronous>, transform_indices = @transform_2, window_bounds = array<i64: 1, 32>}, {pipeline_mode = #tpu.pipeline_mode<synchronous>, transform_indices = @transform_3, window_bounds = array<i64: 1, 32>}, {pipeline_mode = #tpu.pipeline_mode<synchronous>, transform_indices = @transform_4, window_bounds = array<i64: 1, 32>}, {pipeline_mode = #tpu.pipeline_mode<synchronous>, transform_indices = @transform_5, window_bounds = array<i64: 1, 32>}, {transform_indices = @transform_6, window_bounds = array<i64: 8, 32>}]} {
    %c8_i32 = arith.constant 8 : i32
    %0 = arith.muli %arg0, %c8_i32 : i32
    %c0_i32 = arith.constant 0 : i32
    %c8_i32_0 = arith.constant 8 : i32
    %1 = arith.addi %c0_i32, %c8_i32_0 : i32
    %c1_i32 = arith.constant 1 : i32
    scf.for %arg10 = %c0_i32 to %1 step %c1_i32  : i32 {
      %c1_i32_19 = arith.constant 1 : i32
      %35 = arith.muli %arg10, %c1_i32_19 : i32
      %c0_i32_20 = arith.constant 0 : i32
      %36 = arith.addi %c0_i32_20, %35 : i32
      %37 = arith.addi %0, %36 : i32
      %38 = arith.index_cast %37 : i32 to index
      %39 = memref.load %arg1[%38] : memref<16xi32, #tpu.memory_space<smem>>
      %40 = arith.index_cast %39 : i32 to index
      %c0_21 = arith.constant 0 : index
      %41 = vector.load %arg3[%40, %c0_21] : memref<64x32xf32, #tpu.memory_space<vmem>>, vector<1x32xf32>
      %42 = arith.index_cast %36 : i32 to index
      %c0_22 = arith.constant 0 : index
      %43 = vector.load %arg9[%42, %c0_22] : memref<8x32xf32, #tpu.memory_space<vmem>>, vector<1x32xf32>
      tpu.vector_store %arg9[%42, %c0_22], %41 {strides = array<i32>} : memref<8x32xf32, #tpu.memory_space<vmem>>, vector<1x32xf32>,
    }
    %c8_i32_1 = arith.constant 8 : i32
    %c0 = arith.constant 0 : index
    %c0_2 = arith.constant 0 : index
    %2 = vector.load %arg9[%c0, %c0_2] : memref<8x32xf32, #tpu.memory_space<vmem>>, vector<8x32xf32>
    %c0_3 = arith.constant 0 : index
    %c0_4 = arith.constant 0 : index
    %3 = vector.load %arg4[%c0_3, %c0_4] : memref<1x32xf32, #tpu.memory_space<vmem>>, vector<1x32xf32>
    %4 = vector.broadcast %3 : vector<1x32xf32> to vector<8x32xf32>
    %5 = arith.addf %2, %4 : vector<8x32xf32>
    %c0_5 = arith.constant 0 : index
    %c0_6 = arith.constant 0 : index
    %6 = vector.load %arg2[%c0_5, %c0_6] : memref<8x1xf32, #tpu.memory_space<vmem>>, vector<8x1xf32>
    %c0_7 = arith.constant 0 : index
    %c0_8 = arith.constant 0 : index
    %7 = vector.load %arg5[%c0_7, %c0_8] : memref<1x32xf32, #tpu.memory_space<vmem>>, vector<1x32xf32>
    %8 = vector.broadcast %6 : vector<8x1xf32> to vector<8x32xf32>
    %9 = vector.broadcast %7 : vector<1x32xf32> to vector<8x32xf32>
    %10 = arith.mulf %8, %9 : vector<8x32xf32>
    %11 = arith.addf %5, %10 : vector<8x32xf32>
    %c0_9 = arith.constant 0 : index
    %c0_10 = arith.constant 0 : index
    %12 = vector.load %arg6[%c0_9, %c0_10] : memref<1x32xf32, #tpu.memory_space<vmem>>, vector<1x32xf32>
    %c0_11 = arith.constant 0 : index
    %c0_12 = arith.constant 0 : index
    %13 = vector.load %arg7[%c0_11, %c0_12] : memref<1x32xf32, #tpu.memory_space<vmem>>, vector<1x32xf32>
    %cst = arith.constant dense<0.000000e+00> : vector<8xf32>
    %14 = vector.multi_reduction <add>, %11, %cst [1] : vector<8x32xf32> to vector<8xf32>
    %15 = vector.shape_cast %14 : vector<8xf32> to vector<8x1xf32>
    %cst_13 = arith.constant 3.200000e+01 : f32
    %16 = vector.broadcast %cst_13 : f32 to vector<8x1xf32>
    %17 = arith.divf %15, %16 : vector<8x1xf32>
    %18 = vector.broadcast %17 : vector<8x1xf32> to vector<8x32xf32>
    %19 = arith.subf %11, %18 : vector<8x32xf32>
    %20 = arith.mulf %19, %19 : vector<8x32xf32>
    %cst_14 = arith.constant dense<0.000000e+00> : vector<8xf32>
    %21 = vector.multi_reduction <add>, %20, %cst_14 [1] : vector<8x32xf32> to vector<8xf32>
    %22 = vector.shape_cast %21 : vector<8xf32> to vector<8x1xf32>
    %cst_15 = arith.constant 3.200000e+01 : f32
    %23 = vector.broadcast %cst_15 : f32 to vector<8x1xf32>
    %24 = arith.divf %22, %23 : vector<8x1xf32>
    %cst_16 = arith.constant 9.99999974E-6 : f32
    %25 = vector.broadcast %cst_16 : f32 to vector<8x1xf32>
    %26 = arith.addf %24, %25 : vector<8x1xf32>
    %27 = math.rsqrt %26 : vector<8x1xf32>
    %28 = vector.broadcast %27 : vector<8x1xf32> to vector<8x32xf32>
    %29 = arith.mulf %19, %28 : vector<8x32xf32>
    %30 = vector.broadcast %12 : vector<1x32xf32> to vector<8x32xf32>
    %31 = arith.mulf %29, %30 : vector<8x32xf32>
    %32 = vector.broadcast %13 : vector<1x32xf32> to vector<8x32xf32>
    %33 = arith.addf %31, %32 : vector<8x32xf32>
    %c0_17 = arith.constant 0 : index
    %c0_18 = arith.constant 0 : index
    %34 = vector.load %arg8[%c0_17, %c0_18] : memref<8x32xf32, #tpu.memory_space<vmem>>, vector<8x32xf32>
    tpu.vector_store %arg8[%c0_17, %c0_18], %33 {strides = array<i32>} : memref<8x32xf32, #tpu.memory_space<vmem>>, vector<8x32xf32>,
    return
  }
  func.func @transform_0(%arg0: i32, %arg1: memref<16xi32, #tpu.memory_space<smem>>) -> (i32, i32) {
    %c0_i32 = arith.constant 0 : i32
    %c0_i32_0 = arith.constant 0 : i32
    return %arg0, %c0_i32 : i32, i32
  }
  func.func @transform_1(%arg0: i32, %arg1: memref<16xi32, #tpu.memory_space<smem>>) -> (i32, i32) {
    %c0_i32 = arith.constant 0 : i32
    %c0_i32_0 = arith.constant 0 : i32
    %c0_i32_1 = arith.constant 0 : i32
    return %c0_i32, %c0_i32_0 : i32, i32
  }
  func.func @transform_2(%arg0: i32, %arg1: memref<16xi32, #tpu.memory_space<smem>>) -> (i32, i32) {
    %c0_i32 = arith.constant 0 : i32
    %c0_i32_0 = arith.constant 0 : i32
    %c0_i32_1 = arith.constant 0 : i32
    return %c0_i32, %c0_i32_0 : i32, i32
  }
  func.func @transform_3(%arg0: i32, %arg1: memref<16xi32, #tpu.memory_space<smem>>) -> (i32, i32) {
    %c0_i32 = arith.constant 0 : i32
    %c0_i32_0 = arith.constant 0 : i32
    %c0_i32_1 = arith.constant 0 : i32
    return %c0_i32, %c0_i32_0 : i32, i32
  }
  func.func @transform_4(%arg0: i32, %arg1: memref<16xi32, #tpu.memory_space<smem>>) -> (i32, i32) {
    %c0_i32 = arith.constant 0 : i32
    %c0_i32_0 = arith.constant 0 : i32
    %c0_i32_1 = arith.constant 0 : i32
    return %c0_i32, %c0_i32_0 : i32, i32
  }
  func.func @transform_5(%arg0: i32, %arg1: memref<16xi32, #tpu.memory_space<smem>>) -> (i32, i32) {
    %c0_i32 = arith.constant 0 : i32
    %c0_i32_0 = arith.constant 0 : i32
    %c0_i32_1 = arith.constant 0 : i32
    return %c0_i32, %c0_i32_0 : i32, i32
  }
  func.func @transform_6(%arg0: i32, %arg1: memref<16xi32, #tpu.memory_space<smem>>) -> (i32, i32) {
    %c0_i32 = arith.constant 0 : i32
    %c0_i32_0 = arith.constant 0 : i32
    return %arg0, %c0_i32 : i32, i32
  }
}

</mosaic_0001>

<llo_original>
// kernel: word_embedding.1
$region0: #{word_embedding.1}
  #allocation0 [shape = 'u32[]', space=smem, size = 0x4, offset = 0x4, fixed_abs, tag = 'smem constant byte address 0x4 - core index']
  #allocation1 [shape = 'u32[144,128]{1,0:T(1,128)}', space=vmem, size = 0x12000, scoped, tag = 'internal scratch']
  #allocation2 [shape = 'f32[8,32]{1,0:T(8,128)}', space=vmem, size = 0x1000, scoped, tag = 'scratch operand']
  #allocation3 [shape = 's32[1]{0}', space=sflag, size = 0x4, scoped, tag = 'scoped memory for word_embedding.1']
  #allocation4 [shape = 'u8[512]{0}', space=smem, size = 0x200, scoped, tag = 'prefetched SMEM operand 0']
  %s0 = inlined_call_operand.vmem [shape: s32[16], index: 0, kind: input, shape index: {}]
  %s1 = inlined_call_operand.vmem [shape: f32[16,1], index: 1, kind: input, shape index: {}]
  %s2 = inlined_call_operand.vmem [shape: f32[64,32], index: 2, kind: input, shape index: {}]
  %s3 = inlined_call_operand.vmem [shape: f32[1,32], index: 3, kind: input, shape index: {}]
  %s4 = inlined_call_operand.vmem [shape: f32[1,32], index: 4, kind: input, shape index: {}]
  %s5 = inlined_call_operand.vmem [shape: f32[1,32], index: 5, kind: input, shape index: {}]
  %s6 = inlined_call_operand.vmem [shape: f32[1,32], index: 6, kind: input, shape index: {}]
  %s7 = inlined_call_operand.hbm [shape: f32[16,32], index: 7, kind: output, shape index: {}]
  %s8 = sld [smem:[#allocation0]]
  $region64: #{word_embedding.1} parent=0
    _
  %s10 = ssub.s32 1, %s8
  %s11 = scalar_select 0, %s10, %s8
  %s12 = sshll.u32 %s0, 4
  %s13 = int_to_ptr.vmem [resolvable:$true] %s12
  %15 = dma.vmem_to_smem %s13, 16, [#allocation4], [#allocation3]
  %16 = dma.done [#allocation3], 16
  %17 = sfence
  $region1: #{word_embedding.1} parent=0
    #allocation5 [shape = 'u8[8192]{0}', space=vmem, size = 0x2000, scoped, tag = 'output window, operand 0']
    #allocation6 [shape = 's32[2]{0}', space=sflag, size = 0x8, scoped, tag = 'scoped memory for word_embedding.1']
    %18 = vsyncpa [#allocation6], 0
    %s19 = scalar_lea.sflag [#allocation6], 1
    %20 = vsyncpa %s19, 0
    loop: start=0, step=1, limit=4
    $region2: #{word_embedding.1} parent=1 // loop_pre_header
      _
    $region3: #{word_embedding.1} parent=1 // loop_header
      %s22 = sphi 0, %s26
      %p23 = scmp.ge.s32.totalorder %s22, 4
      %s32 = sphi 0, %s34
      %s35 = sphi 0, %s32
      %s36 = sphi 0, %s35
      %s52 = sphi 0, %s36
      %s56 = sphi 0, %s56
      %s58 = sphi 0, %s56
      %s59 = sphi 0, %s58
      %s73 = sphi 0, %s59
      %s77 = sphi 0, %s77
      %s79 = sphi 0, %s77
      %s80 = sphi 0, %s79
      %s94 = sphi 0, %s80
      %s98 = sphi 0, %s98
      %s100 = sphi 0, %s98
      %s101 = sphi 0, %s100
      %s115 = sphi 0, %s101
      %s119 = sphi 0, %s119
      %s121 = sphi 0, %s119
      %s122 = sphi 0, %s121
      %s136 = sphi 0, %s122
      %s140 = sphi 0, %s140
      %s142 = sphi 0, %s140
      %s143 = sphi 0, %s142
      %s157 = sphi 0, %s143
      %s163 = sphi 0, %s165
      %s166 = sphi 0, %s163
      %s167 = sphi 0, %s166
      %s183 = sphi 0, %s167
    $region4: #{word_embedding.1} parent=1 // loop_header_branch
      %25 = sbr.rel (%p23) target = $region8
    $region5: #{word_embedding.1} parent=1 // loop_body
      %s27 = ssub.s32 %s22, 1
      %s28 = ssub.s32 %s22, 2
      %s29 = sadd.s32 %s22, 1
      %s30 = ssub.s32 %s22, %s29
      %p31 = scmp.eq.s32.totalorder %s30, 0
      %s33 = sadd.s32 %s32, 1
      %s34 = scalar_select %p31, %s32, %s33
      %p37 = pneg %p31
      %p38 = scmp.eq.s32.totalorder %s22, 1
      %p39 = por %p37, %p38
      %p40 = scmp.ne.s32.totalorder %s32, %s35
      %p41 = scmp.eq.s32.totalorder %s22, 0
      %p42 = por %p40, %p41
      %p43 = scmp.ne.s32.totalorder %s32, %s35
      %p44 = scmp.eq.s32.totalorder %s27, 1
      %p45 = por %p43, %p44
      %p46 = scmp.ne.s32.totalorder %s35, %s36
      %p47 = scmp.eq.s32.totalorder %s27, 0
      %p48 = por %p46, %p47
      %p49 = scmp.ne.s32.totalorder %s35, %s36
      %p50 = scmp.eq.s32.totalorder %s28, 1
      %p51 = por %p49, %p50
      %p53 = scmp.ne.s32.totalorder %s36, %s52
      %p54 = scmp.eq.s32.totalorder %s28, 0
      %p55 = por %p53, %p54
      %s57 = sadd.s32 %s56, 1
      %p60 = scmp.eq.s32.totalorder %s22, 1
      %p61 = scmp.ne.s32.totalorder %s56, %s58
      %p62 = scmp.eq.s32.totalorder %s22, 0
      %p63 = por %p61, %p62
      %p64 = scmp.ne.s32.totalorder %s56, %s58
      %p65 = scmp.eq.s32.totalorder %s27, 1
      %p66 = por %p64, %p65
      %p67 = scmp.ne.s32.totalorder %s58, %s59
      %p68 = scmp.eq.s32.totalorder %s27, 0
      %p69 = por %p67, %p68
      %p70 = scmp.ne.s32.totalorder %s58, %s59
      %p71 = scmp.eq.s32.totalorder %s28, 1
      %p72 = por %p70, %p71
      %p74 = scmp.ne.s32.totalorder %s59, %s73
      %p75 = scmp.eq.s32.totalorder %s28, 0
      %p76 = por %p74, %p75
      %s78 = sadd.s32 %s77, 1
      %p81 = scmp.eq.s32.totalorder %s22, 1
      %p82 = scmp.ne.s32.totalorder %s77, %s79
      %p83 = scmp.eq.s32.totalorder %s22, 0
      %p84 = por %p82, %p83
      %p85 = scmp.ne.s32.totalorder %s77, %s79
      %p86 = scmp.eq.s32.totalorder %s27, 1
      %p87 = por %p85, %p86
      %p88 = scmp.ne.s32.totalorder %s79, %s80
      %p89 = scmp.eq.s32.totalorder %s27, 0
      %p90 = por %p88, %p89
      %p91 = scmp.ne.s32.totalorder %s79, %s80
      %p92 = scmp.eq.s32.totalorder %s28, 1
      %p93 = por %p91, %p92
      %p95 = scmp.ne.s32.totalorder %s80, %s94
      %p96 = scmp.eq.s32.totalorder %s28, 0
      %p97 = por %p95, %p96
      %s99 = sadd.s32 %s98, 1
      %p102 = scmp.eq.s32.totalorder %s22, 1
      %p103 = scmp.ne.s32.totalorder %s98, %s100
      %p104 = scmp.eq.s32.totalorder %s22, 0
      %p105 = por %p103, %p104
      %p106 = scmp.ne.s32.totalorder %s98, %s100
      %p107 = scmp.eq.s32.totalorder %s27, 1
      %p108 = por %p106, %p107
      %p109 = scmp.ne.s32.totalorder %s100, %s101
      %p110 = scmp.eq.s32.totalorder %s27, 0
      %p111 = por %p109, %p110
      %p112 = scmp.ne.s32.totalorder %s100, %s101
      %p113 = scmp.eq.s32.totalorder %s28, 1
      %p114 = por %p112, %p113
      %p116 = scmp.ne.s32.totalorder %s101, %s115
      %p117 = scmp.eq.s32.totalorder %s28, 0
      %p118 = por %p116, %p117
      %s120 = sadd.s32 %s119, 1
      %p123 = scmp.eq.s32.totalorder %s22, 1
      %p124 = scmp.ne.s32.totalorder %s119, %s121
      %p125 = scmp.eq.s32.totalorder %s22, 0
      %p126 = por %p124, %p125
      %p127 = scmp.ne.s32.totalorder %s119, %s121
      %p128 = scmp.eq.s32.totalorder %s27, 1
      %p129 = por %p127, %p128
      %p130 = scmp.ne.s32.totalorder %s121, %s122
      %p131 = scmp.eq.s32.totalorder %s27, 0
      %p132 = por %p130, %p131
      %p133 = scmp.ne.s32.totalorder %s121, %s122
      %p134 = scmp.eq.s32.totalorder %s28, 1
      %p135 = por %p133, %p134
      %p137 = scmp.ne.s32.totalorder %s122, %s136
      %p138 = scmp.eq.s32.totalorder %s28, 0
      %p139 = por %p137, %p138
      %s141 = sadd.s32 %s140, 1
      %p144 = scmp.eq.s32.totalorder %s22, 1
      %p145 = scmp.ne.s32.totalorder %s140, %s142
      %p146 = scmp.eq.s32.totalorder %s22, 0
      %p147 = por %p145, %p146
      %p148 = scmp.ne.s32.totalorder %s140, %s142
      %p149 = scmp.eq.s32.totalorder %s27, 1
      %p150 = por %p148, %p149
      %p151 = scmp.ne.s32.totalorder %s142, %s143
      %p152 = scmp.eq.s32.totalorder %s27, 0
      %p153 = por %p151, %p152
      %p154 = scmp.ne.s32.totalorder %s142, %s143
      %p155 = scmp.eq.s32.totalorder %s28, 1
      %p156 = por %p154, %p155
      %p158 = scmp.ne.s32.totalorder %s143, %s157
      %p159 = scmp.eq.s32.totalorder %s28, 0
      %p160 = por %p158, %p159
      %s161 = ssub.s32 %s22, %s29
      %p162 = scmp.eq.s32.totalorder %s161, 0
      %s164 = sadd.s32 %s163, 1
      %s165 = scalar_select %p162, %s163, %s164
      %p168 = pneg %p162
      %p169 = scmp.eq.s32.totalorder %s22, 1
      %p170 = por %p168, %p169
      %p171 = scmp.ne.s32.totalorder %s163, %s166
      %p172 = scmp.eq.s32.totalorder %s22, 0
      %p173 = por %p171, %p172
      %p174 = scmp.ne.s32.totalorder %s163, %s166
      %p175 = scmp.eq.s32.totalorder %s27, 1
      %p176 = por %p174, %p175
      %p177 = scmp.ne.s32.totalorder %s166, %s167
      %p178 = scmp.eq.s32.totalorder %s27, 0
      %p179 = por %p177, %p178
      %p180 = scmp.ne.s32.totalorder %s166, %s167
      %p181 = scmp.eq.s32.totalorder %s28, 1
      %p182 = por %p180, %p181
      %p184 = scmp.ne.s32.totalorder %s167, %s183
      %p185 = scmp.eq.s32.totalorder %s28, 0
      %p186 = por %p184, %p185
      %p187 = scmp.le.s32.totalorder 1, %s22
      %p188 = scmp.lt.s32.totalorder %s22, 3
      %p189 = pnand %p187, %p188
      %p190 = pneg %p189
      // Predicated region
      $region9: #{word_embedding.1} parent=5 // pred_check
        _
      $region10: #{word_embedding.1} parent=5 // pred_check_branch
        %192 = sbr.rel (%p189) target = $region12
      $region11: #{word_embedding.1} parent=5 // pred_region
        %s193 = ssub.s32 %s22, 1
        // Predicated region
        $region13: #{word_embedding.1} parent=11 // pred_check
          %p194 = pneg %p69
        $region14: #{word_embedding.1} parent=11 // pred_check_branch
          %196 = sbr.rel (%p194) target = $region16
        $region15: #{word_embedding.1} parent=11 // pred_region
          _
        $region16: #{word_embedding.1} parent=11 // pred_fallthru
          _
        // Predicated region
        $region17: #{word_embedding.1} parent=11 // pred_check
          %p197 = pneg %p90
        $region18: #{word_embedding.1} parent=11 // pred_check_branch
          %199 = sbr.rel (%p197) target = $region20
        $region19: #{word_embedding.1} parent=11 // pred_region
          _
        $region20: #{word_embedding.1} parent=11 // pred_fallthru
          _
        // Predicated region
        $region21: #{word_embedding.1} parent=11 // pred_check
          %p200 = pneg %p111
        $region22: #{word_embedding.1} parent=11 // pred_check_branch
          %202 = sbr.rel (%p200) target = $region24
        $region23: #{word_embedding.1} parent=11 // pred_region
          _
        $region24: #{word_embedding.1} parent=11 // pred_fallthru
          _
        // Predicated region
        $region25: #{word_embedding.1} parent=11 // pred_check
          %p203 = pneg %p132
        $region26: #{word_embedding.1} parent=11 // pred_check_branch
          %205 = sbr.rel (%p203) target = $region28
        $region27: #{word_embedding.1} parent=11 // pred_region
          _
        $region28: #{word_embedding.1} parent=11 // pred_fallthru
          _
        // Predicated region
        $region29: #{word_embedding.1} parent=11 // pred_check
          %p206 = pneg %p153
        $region30: #{word_embedding.1} parent=11 // pred_check_branch
          %208 = sbr.rel (%p206) target = $region32
        $region31: #{word_embedding.1} parent=11 // pred_region
          _
        $region32: #{word_embedding.1} parent=11 // pred_fallthru
          _
      $region12: #{word_embedding.1} parent=5 // pred_fallthru
        _
      %p209 = scmp.lt.s32.totalorder %s22, 2
      // Predicated region
      $region33: #{word_embedding.1} parent=5 // pred_check
        %p210 = pneg %p209
      $region34: #{word_embedding.1} parent=5 // pred_check_branch
        %212 = sbr.rel (%p210) target = $region36
      $region35: #{word_embedding.1} parent=5 // pred_region
        // Predicated region
        $region37: #{word_embedding.1} parent=35 // pred_check
          %p213 = pneg %p42
        $region38: #{word_embedding.1} parent=35 // pred_check_branch
          %215 = sbr.rel (%p213) target = $region40
        $region39: #{word_embedding.1} parent=35 // pred_region
          %p216 = scmp.lt.s32.totalorder %s22, 1
          %s217 = scalar_select %p216, %s22, 1
          %s218 = smul.addr %s217, 8
          %s219 = scalar_lea.vmem %s1, %s218
        $region40: #{word_embedding.1} parent=35 // pred_fallthru
          _
      $region36: #{word_embedding.1} parent=5 // pred_fallthru
        _
      %p220 = scmp.le.s32.totalorder 1, %s22
      %p221 = scmp.lt.s32.totalorder %s22, 3
      %p222 = pnand %p220, %p221
      %p223 = pneg %p222
      // Predicated region
      $region41: #{word_embedding.1} parent=5 // pred_check
        _
      $region42: #{word_embedding.1} parent=5 // pred_check_branch
        %225 = sbr.rel (%p222) target = $region44
      $region43: #{word_embedding.1} parent=5 // pred_region
        %s226 = ssub.s32 %s22, 1
        %p227 = scmp.lt.s32.totalorder %s27, 1
        %s228 = scalar_select %p227, %s27, 1
        %s229 = smul.addr %s228, 8
        %s230 = scalar_lea.vmem %s1, %s229
        %p231 = pneg %p48
        %p232 = pneg %p45
        %p233 = pneg %p69
        %p234 = pneg %p66
        %p235 = pneg %p90
        %p236 = pneg %p87
        %p237 = pneg %p111
        %p238 = pneg %p108
        %p239 = pneg %p132
        %p240 = pneg %p129
        %p241 = pneg %p153
        %p242 = pneg %p150
        %p243 = pneg %p179
        %p244 = pneg %p176
        %s245 = sand.u32 %s166, 1
        %s246 = scalar_lea.sflag [#allocation6], %s245
        %s247 = sand.u32 %s166, 1
        %s248 = smul.addr %s247, 8
        %s249 = scalar_lea.vmem [#allocation5], %s248
        %p250 = scmp.lt.s32.totalorder %s27, 1
        %s251 = scalar_select %p250, %s27, 1
        %s252 = smul.addr %s251, 8
        %s253 = scalar_lea.vmem %s1, %s252
        %s254 = smul.u32 %s27, 8
        loop: start=0, step=1, limit=8
        $region45: #{word_embedding.1} parent=43 // loop_pre_header
          _
        $region46: #{word_embedding.1} parent=43 // loop_header
          %s256 = sphi 0, %s260
          %p257 = scmp.ge.s32.totalorder %s256, 8
        $region47: #{word_embedding.1} parent=43 // loop_header_branch
          %259 = sbr.rel (%p257) target = $region51
        $region48: #{word_embedding.1} parent=43 // loop_body
          %s261 = sadd.s32 %s254, %s256
          %s262 = sld [smem:[#allocation4 + %s261]]
          %s263 = scalar_lea.vmem %s2, %s262
          %v264 = vld [vmem:[%s263] sm:$0x1]
          %s265 = scalar_lea.vmem [#allocation2], %s256
          %vm266 = vcmask 253952
          %267 = vst.msk [vmem:[%s265] sm:$0x1] %vm266, %v264
        $region49: #{word_embedding.1} parent=43 // loop_footer
          %s260 = sadd.s32 1, %s256
        $region50: #{word_embedding.1} parent=43 // loop_footer_branch
          %255 = sbr.rel target = $region46
        $region51: #{word_embedding.1} parent=43 // loop_exit
          _
        %v268 = vld [vmem:[#allocation2] sm:$0xff]
        %v269 = vld [vmem:[%s3] sm:$0x1]
        %v271 = vlaneseq
        %v272 = vshrl.u32 %v271, 7
        %v273 = vsub.s32 0, %v272
        %v274 = vrot.slane %v269, %v273
        %v276 = vadd.f32 %v268, %v274
        %v277 = vld [vmem:[%s253] sm:$0xff]
        %v278 = vld [vmem:[%s4] sm:$0x1]
        %280 = vset.pattern.permute.xlu0 0
        %281 = vperm.xlu0 %280, %v277
        %v282 = vpop.permute.xlu0 %281
        %v285 = vlaneseq
        %v286 = vshrl.u32 %v285, 7
        %v287 = vsub.s32 0, %v286
        %v288 = vrot.slane %v278, %v287
        %v290 = vmul.f32 %v282, %v288
        %v291 = vadd.f32 %v276, %v290
        %v292 = vld [vmem:[%s5] sm:$0x1]
        %v293 = vld [vmem:[%s6] sm:$0x1]
        %vm294 = vcmask 261120
        %v295 = vsel %vm294, %v291, 0.0
        %296 = vadd.xlane.f32.xlu0 %v295
        %v297 = vpop.xlane.xlu0 %296
        %v298 = vrcp.pop 32.0
        %v299 = vmul.f32 %v297, %v298
        %v300 = vsub.f32 %v291, %v299
        %v301 = vmul.f32 %v300, %v300
        %v302 = vsel %vm294, %v301, 0.0
        %303 = vadd.xlane.f32.xlu0 %v302
        %v304 = vpop.xlane.xlu0 %303
        %v305 = vmul.f32 %v304, %v298
        %v306 = vadd.f32 %v305, 1e-05
        %v307 = vrsqrt.pop %v306
        %v308 = vmul.f32 %v300, %v307
        %v310 = vlaneseq
        %v311 = vshrl.u32 %v310, 7
        %v312 = vsub.s32 0, %v311
        %v313 = vrot.slane %v292, %v312
        %v315 = vmul.f32 %v308, %v313
        %v317 = vlaneseq
        %v318 = vshrl.u32 %v317, 7
        %v319 = vsub.s32 0, %v318
        %v320 = vrot.slane %v293, %v319
        %v322 = vadd.f32 %v315, %v320
        %323 = vst.msk [vmem:[%s249] sm:$0xff] %vm294, %v322
        %s324 = sand.u32 %s166, 1
        %s325 = scalar_lea.sflag [#allocation6], %s324
        %s326 = sand.u32 %s166, 1
        %s327 = smul.addr %s326, 8
        %s328 = scalar_lea.vmem [#allocation5], %s327
        // Predicated region
        $region52: #{word_embedding.1} parent=43 // pred_check
          %p329 = pneg %p176
        $region53: #{word_embedding.1} parent=43 // pred_check_branch
          %331 = sbr.rel (%p329) target = $region55
        $region54: #{word_embedding.1} parent=43 // pred_region
          %s333 = ssub.s32 128, 128
          %334 = vsyncadd %s325, %s333
          %s335 = smul.addr %s27, 128
          %s336 = scalar_lea.hbm %s7, %s335
          %s338 = sshll.u32 %s328, 4
          %s339 = int_to_ptr.vmem [resolvable:$true] %s338
          %341 = dma.vmem_to_hbm [thread:$0]  %s339, 128, %s336, %s325
        $region55: #{word_embedding.1} parent=43 // pred_fallthru
          _
      $region44: #{word_embedding.1} parent=5 // pred_fallthru
        _
      %p342 = scmp.le.s32.totalorder 2, %s22
      // Predicated region
      $region56: #{word_embedding.1} parent=5 // pred_check
        %p343 = pneg %p342
      $region57: #{word_embedding.1} parent=5 // pred_check_branch
        %345 = sbr.rel (%p343) target = $region59
      $region58: #{word_embedding.1} parent=5 // pred_region
        %s346 = ssub.s32 %s22, 2
        // Predicated region
        $region60: #{word_embedding.1} parent=58 // pred_check
          %p347 = pneg %p182
        $region61: #{word_embedding.1} parent=58 // pred_check_branch
          %349 = sbr.rel (%p347) target = $region63
        $region62: #{word_embedding.1} parent=58 // pred_region
          %s350 = sand.u32 %s167, 1
          %s351 = scalar_lea.sflag [#allocation6], %s350
          %s352 = sand.u32 %s167, 1
          %s353 = smul.addr %s352, 8
          %s354 = scalar_lea.vmem [#allocation5], %s353
          %355 = dma.done %s351, 128
        $region63: #{word_embedding.1} parent=58 // pred_fallthru
          _
      $region59: #{word_embedding.1} parent=5 // pred_fallthru
        _
    $region6: #{word_embedding.1} parent=1 // loop_footer
      %s26 = sadd.s32 1, %s22
    $region7: #{word_embedding.1} parent=1 // loop_footer_branch
      %21 = sbr.rel target = $region3
    $region8: #{word_embedding.1} parent=1 // loop_exit
      _
    %356 = vsyncpa [#allocation6], 1
    %s357 = scalar_lea.sflag [#allocation6], 1
    %358 = vsyncpa %s357, 1

</llo_original>
